<compile_context>
chip_gen: v7x
topology: tpu7x:2x2x1
jax: 0.10.0
libtpu: 0.0.40
codegen_flags: <defaults>
</compile_context>

<pallas_src>
import jax
import jax.numpy as jnp
from jax.experimental import pallas as pl
from jax.experimental.pallas import tpu as pltpu


def _quant_emb_kernel(x_ref, bnd_ref, emb_ref, out_ref):
    # x_ref:   (TM, 1)       f32 values
    # bnd_ref: (2, n_bins)   row 0 = [-inf, b0..b_{n-2}], row 1 = [b0..b_{n-2}, +inf]
    # emb_ref: (n_bins, TH)  embedding table (column tile)
    # out_ref: (TM, TH)
    x = x_ref[...]                       # (TM, 1)
    bnd = bnd_ref[...]                   # (2, n_bins)
    lo = bnd[0:1, :]                     # (1, n_bins)   b_{j-1}
    hi = bnd[1:2, :]                     # (1, n_bins)   b_j

    m_lo = lo < x                        # (TM, n_bins)  b_{j-1} < x
    m_hi = hi < x                        # (TM, n_bins)  b_j     < x
    # bucket j selected iff b_{j-1} < x <= b_j.  Since m_lo >= m_hi elementwise
    # (sorted bounds), xor == and-not; casting the 0/1 mask to the table dtype
    # is exact and lets the MXU run at its native rate.
    onehot = jnp.logical_xor(m_lo, m_hi).astype(emb_ref.dtype)   # (TM, n_bins)

    out_ref[...] = jnp.dot(
        onehot, emb_ref[...], preferred_element_type=jnp.float32
    ).astype(out_ref.dtype)


def _round_up(a, m):
    return (a + m - 1) // m * m


def quantization_embedding(x, bounds, emb_table, *, tile_m=1024, tile_h=512):
    """x: (B, T) float; bounds: (n_bins - 1,); emb_table: (n_bins, hidden)."""
    B, T = x.shape
    n_bins, hidden = emb_table.shape
    N = B * T
    itemsize = jnp.dtype(emb_table.dtype).itemsize

    # Column tiling over hidden only when it splits into lane-aligned tiles;
    # otherwise keep the full hidden as one lane-dense block.
    if hidden % tile_h == 0 and tile_h % 128 == 0:
        th = tile_h
    else:
        th = hidden
    n_col = hidden // th
    table_bufs = 1 if n_col == 1 else 2   # constant-index table is single-buffered

    # Rough per-step VMEM footprint (buffers + live one-hot) for a given row tile.
    def _est_vmem(tm_):
        return (2 * tm_ * 4                              # x tiles (double-buffered)
                + 2 * n_bins * 4                         # bounds
                + table_bufs * n_bins * th * itemsize    # table block(s)
                + 2 * tm_ * th * itemsize                # output tiles (double-buffered)
                + 2 * tm_ * n_bins * 4)                  # one-hot / masks live values

    # Row tiling: as large as VMEM comfortably allows (amortizes per-step grid
    # overhead, fills the MXU M dim); clamp to the 8-padded problem size so
    # tiny inputs don't over-pad.
    tm = min(tile_m, _round_up(N, 8))
    while tm > 256 and _est_vmem(tm) > 12 * 1024 * 1024:
        tm = max(256, _round_up(tm // 2, 8))
    n_pad = _round_up(N, tm)

    x_flat = x.reshape(N, 1).astype(jnp.float32)
    if n_pad != N:
        x_flat = jnp.pad(x_flat, ((0, n_pad - N), (0, 0)))

    # Bounds rows: lo has -inf prepended (b_{-1}), hi has +inf appended (b_{n-1}).
    b = bounds.astype(jnp.float32)
    lo = jnp.concatenate([jnp.full((1,), -jnp.inf, jnp.float32), b])
    hi = jnp.concatenate([b, jnp.full((1,), jnp.inf, jnp.float32)])
    bnd = jnp.stack([lo, hi], axis=0)                      # (2, n_bins)

    # BlockSpecs.  Constant-index blocks are single-buffered (DMA'd once).
    x_spec = pl.BlockSpec((tm, 1), lambda i, j: (i, 0))
    bnd_spec = pl.BlockSpec((2, n_bins), lambda i, j: (0, 0),
                            pipeline_mode=pl.Buffered(1))
    if n_col == 1:
        emb_spec = pl.BlockSpec((n_bins, th), lambda i, j: (0, 0),
                                pipeline_mode=pl.Buffered(1))
    else:
        emb_spec = pl.BlockSpec((n_bins, th), lambda i, j: (0, j))
    out_spec = pl.BlockSpec((tm, th), lambda i, j: (i, j))

    # Raise the scoped VMEM limit only when the default (16 MiB on v5e) could
    # be tight; leave headroom, never request more than 64 MiB (v7x physical).
    cp_kwargs = dict(dimension_semantics=("parallel", "parallel"))
    est = _est_vmem(tm)
    if est > 8 * 1024 * 1024:
        cp_kwargs["vmem_limit_bytes"] = int(min(2 * est, 64 * 1024 * 1024))

    grid = (n_pad // tm, n_col)
    out = pl.pallas_call(
        _quant_emb_kernel,
        out_shape=jax.ShapeDtypeStruct((n_pad, hidden), emb_table.dtype),
        grid=grid,
        in_specs=[x_spec, bnd_spec, emb_spec],
        out_specs=out_spec,
        compiler_params=pltpu.CompilerParams(**cp_kwargs),
    )(x_flat, bnd, emb_table)

    return out[:N].reshape(B, T, hidden)


if __name__ == "__main__":
    # Module hyper-params (synthetic, deterministic init).
    n_bins, min_val, max_val, hidden = 256, 0.0, 1.0, 32
    B, T = 2, 8

    key = jax.random.PRNGKey(0)
    k_x, k_emb = jax.random.split(key)

    # Parameters: bounds = linspace(min, max, n_bins - 1);
    # nn.Embedding weight ~ N(0, 1).
    bounds = jnp.linspace(min_val, max_val, n_bins - 1, dtype=jnp.float32)
    emb_table = jax.random.normal(k_emb, (n_bins, hidden), dtype=jnp.float32)

    # Inputs slightly outside [min, max] to exercise the edge buckets.
    x = jax.random.uniform(k_x, (B, T), jnp.float32, minval=-0.1, maxval=1.1)

    out = quantization_embedding(x, bounds, emb_table)
    out = jax.block_until_ready(out)

    # Pure-JAX reference (matches torch.bucketize(right=False) + embedding).
    idx_ref = jnp.searchsorted(bounds, x.reshape(-1), side="left")
    ref = emb_table[idx_ref].reshape(B, T, hidden)

    assert out.shape == (B, T, hidden)
    assert jnp.allclose(out, ref, atol=1e-5, rtol=1e-5)
    print("KERNEL_OK")
</pallas_src>

<mosaic_0001>
module attributes {stable_mosaic.version = 11 : i64} {
  func.func @_quant_emb_kernel(%arg0: i32, %arg1: i32, %arg2: memref<16x1xf32, #tpu.memory_space<vmem>>, %arg3: memref<2x256xf32, #tpu.memory_space<vmem>>, %arg4: memref<256x32xf32, #tpu.memory_space<vmem>>, %arg5: memref<16x32xf32, #tpu.memory_space<vmem>>) attributes {dimension_semantics = [#tpu.dimension_semantics<parallel>, #tpu.dimension_semantics<parallel>], iteration_bounds = array<i64: 1, 1>, scalar_prefetch = 0 : i64, scratch_operands = 0 : i64, tpu.core_type = #tpu.core_type<tc>, window_params = [{transform_indices = @transform_0, window_bounds = array<i64: 16, 1>}, {pipeline_mode = #tpu.pipeline_mode<synchronous>, transform_indices = @transform_1, window_bounds = array<i64: 2, 256>}, {pipeline_mode = #tpu.pipeline_mode<synchronous>, transform_indices = @transform_2, window_bounds = array<i64: 256, 32>}, {transform_indices = @transform_3, window_bounds = array<i64: 16, 32>}]} {
    %c0 = arith.constant 0 : index
    %c0_0 = arith.constant 0 : index
    %0 = vector.load %arg2[%c0, %c0_0] : memref<16x1xf32, #tpu.memory_space<vmem>>, vector<16x1xf32>
    %c0_1 = arith.constant 0 : index
    %c0_2 = arith.constant 0 : index
    %1 = vector.load %arg3[%c0_1, %c0_2] : memref<2x256xf32, #tpu.memory_space<vmem>>, vector<2x256xf32>
    %2 = vector.extract_strided_slice %1 {offsets = [0, 0], sizes = [1, 256], strides = [1, 1]} : vector<2x256xf32> to vector<1x256xf32>
    %3 = vector.extract_strided_slice %1 {offsets = [1, 0], sizes = [1, 256], strides = [1, 1]} : vector<2x256xf32> to vector<1x256xf32>
    %4 = vector.broadcast %2 : vector<1x256xf32> to vector<16x256xf32>
    %5 = vector.broadcast %0 : vector<16x1xf32> to vector<16x256xf32>
    %6 = arith.cmpf olt, %4, %5 : vector<16x256xf32>
    %7 = vector.broadcast %3 : vector<1x256xf32> to vector<16x256xf32>
    %8 = vector.broadcast %0 : vector<16x1xf32> to vector<16x256xf32>
    %9 = arith.cmpf olt, %7, %8 : vector<16x256xf32>
    %10 = arith.xori %6, %9 : vector<16x256xi1>
    %11 = arith.extui %10 : vector<16x256xi1> to vector<16x256xi32>
    %12 = arith.sitofp %11 : vector<16x256xi32> to vector<16x256xf32>
    %c0_3 = arith.constant 0 : index
    %c0_4 = arith.constant 0 : index
    %13 = vector.load %arg4[%c0_3, %c0_4] : memref<256x32xf32, #tpu.memory_space<vmem>>, vector<256x32xf32>
    %cst = arith.constant dense<0.000000e+00> : vector<16x32xf32>
    %14 = tpu.matmul %12, %13, %cst {dimension_numbers = #tpu.dot_dimension_numbers<[1], [0], [0], [1], [0, 0, 1, 1], [], []>} : vector<16x256xf32>, vector<256x32xf32>, vector<16x32xf32> -> vector<16x32xf32>
    %c0_5 = arith.constant 0 : index
    %c0_6 = arith.constant 0 : index
    %15 = vector.load %arg5[%c0_5, %c0_6] : memref<16x32xf32, #tpu.memory_space<vmem>>, vector<16x32xf32>
    tpu.vector_store %arg5[%c0_5, %c0_6], %14 {strides = array<i32>} : memref<16x32xf32, #tpu.memory_space<vmem>>, vector<16x32xf32>,
    return
  }
  func.func @transform_0(%arg0: i32, %arg1: i32) -> (i32, i32) {
    %c0_i32 = arith.constant 0 : i32
    %c0_i32_0 = arith.constant 0 : i32
    return %arg0, %c0_i32 : i32, i32
  }
  func.func @transform_1(%arg0: i32, %arg1: i32) -> (i32, i32) {
    %c0_i32 = arith.constant 0 : i32
    %c0_i32_0 = arith.constant 0 : i32
    %c0_i32_1 = arith.constant 0 : i32
    return %c0_i32, %c0_i32_0 : i32, i32
  }
  func.func @transform_2(%arg0: i32, %arg1: i32) -> (i32, i32) {
    %c0_i32 = arith.constant 0 : i32
    %c0_i32_0 = arith.constant 0 : i32
    %c0_i32_1 = arith.constant 0 : i32
    return %c0_i32, %c0_i32_0 : i32, i32
  }
  func.func @transform_3(%arg0: i32, %arg1: i32) -> (i32, i32) {
    %c0_i32 = arith.constant 0 : i32
    return %arg0, %arg1 : i32, i32
  }
}

</mosaic_0001>

<llo_original>
// kernel: tpu_custom_call.1
$region0: #{tpu_custom_call.1}
  #allocation0 [shape = 'u32[]', space=smem, size = 0x4, offset = 0x4, fixed_abs, tag = 'smem constant byte address 0x4 - core index']
  #allocation1 [shape = 'u32[144,128]{1,0:T(1,128)}', space=vmem, size = 0x12000, scoped, tag = 'internal scratch']
  %s0 = inlined_call_operand.vmem [shape: f32[16,1], index: 0, kind: input, shape index: {}]
  %s1 = inlined_call_operand.vmem [shape: f32[2,256], index: 1, kind: input, shape index: {}]
  %s2 = inlined_call_operand.vmem [shape: f32[256,32], index: 2, kind: input, shape index: {}]
  %s3 = inlined_call_operand.hbm [shape: f32[16,32], index: 3, kind: output, shape index: {}]
  %s4 = sld [smem:[#allocation0]]
  $region22: #{tpu_custom_call.1} parent=0
    _
  %s6 = ssub.s32 1, %s4
  %s7 = scalar_select 0, %s6, %s4
  $region1: #{tpu_custom_call.1} parent=0
    #allocation2 [shape = 'u8[8192]{0}', space=vmem, size = 0x2000, scoped, tag = 'output window, operand 0, single buffered']
    #allocation3 [shape = 's32[1]{0}', space=sflag, size = 0x4, scoped, tag = 'scoped memory for tpu_custom_call.1']
    %8 = vsyncpa [#allocation3], 0
    // Predicated region
    $region2: #{tpu_custom_call.1} parent=1 // pred_check
      _
    $region3: #{tpu_custom_call.1} parent=1 // pred_check_branch
      %10 = sbr.rel (0) target = $region5
    $region4: #{tpu_custom_call.1} parent=1 // pred_region
      _
    $region5: #{tpu_custom_call.1} parent=1 // pred_fallthru
      _
    // Predicated region
    $region6: #{tpu_custom_call.1} parent=1 // pred_check
      _
    $region7: #{tpu_custom_call.1} parent=1 // pred_check_branch
      %12 = sbr.rel (0) target = $region9
    $region8: #{tpu_custom_call.1} parent=1 // pred_region
      _
    $region9: #{tpu_custom_call.1} parent=1 // pred_fallthru
      _
    // Predicated region
    $region10: #{tpu_custom_call.1} parent=1 // pred_check
      _
    $region11: #{tpu_custom_call.1} parent=1 // pred_check_branch
      %14 = sbr.rel (0) target = $region13
    $region12: #{tpu_custom_call.1} parent=1 // pred_region
      _
    $region13: #{tpu_custom_call.1} parent=1 // pred_fallthru
      _
    %v15 = vld [vmem:[%s0] sm:$0xff]
    %v16 = vld [vmem:[%s0 + $0x8] sm:$0xff]
    %v17 = vld [vmem:[%s1] sm:$0xf]
    %v19 = vlaneseq
    %v20 = vshrl.u32 %v19, 7
    %v21 = vsub.s32 0, %v20
    %v22 = vrot.slane %v17, %v21
    %v23 = vlaneseq
    %v24 = vshrl.u32 %v23, 7
    %v25 = vsub.s32 2, %v24
    %v26 = vrot.slane %v17, %v25
    %v29 = vlaneseq
    %v30 = vshrl.u32 %v29, 7
    %v31 = vsub.s32 0, %v30
    %v32 = vrot.slane %v22, %v31
    %v33 = vlaneseq
    %v34 = vshrl.u32 %v33, 7
    %v35 = vsub.s32 0, %v34
    %v36 = vrot.slane %v26, %v35
    %38 = vset.pattern.permute.xlu0 0
    %39 = vperm.xlu0 %38, %v15
    %v40 = vpop.permute.xlu0 %39
    %43 = vset.pattern.permute.xlu0 0
    %44 = vperm.xlu0 %43, %v16
    %v45 = vpop.permute.xlu0 %44
    %vm47 = vcmp.lt.f32.partialorder %v32, %v40
    %vm48 = vcmp.lt.f32.partialorder %v36, %v40
    %vm49 = vcmp.lt.f32.partialorder %v32, %v45
    %vm50 = vcmp.lt.f32.partialorder %v36, %v45
    %v51 = vlaneseq
    %v52 = vshrl.u32 %v51, 7
    %v53 = vsub.s32 1, %v52
    %v54 = vrot.slane %v17, %v53
    %v55 = vlaneseq
    %v56 = vshrl.u32 %v55, 7
    %v57 = vsub.s32 3, %v56
    %v58 = vrot.slane %v17, %v57
    %v61 = vlaneseq
    %v62 = vshrl.u32 %v61, 7
    %v63 = vsub.s32 1, %v62
    %v64 = vrot.slane %v54, %v63
    %v65 = vlaneseq
    %v66 = vshrl.u32 %v65, 7
    %v67 = vsub.s32 1, %v66
    %v68 = vrot.slane %v58, %v67
    %vm69 = vcmp.lt.f32.partialorder %v64, %v40
    %vm70 = vcmp.lt.f32.partialorder %v68, %v40
    %vm71 = vcmp.lt.f32.partialorder %v64, %v45
    %vm72 = vcmp.lt.f32.partialorder %v68, %v45
    %vm73 = vmxor %vm47, %vm69
    %vm74 = vmxor %vm48, %vm70
    %vm75 = vmxor %vm49, %vm71
    %vm76 = vmxor %vm50, %vm72
    %v77 = vsel %vm73, 1, 0
    %v78 = vsel %vm74, 1, 0
    %v79 = vsel %vm75, 1, 0
    %v80 = vsel %vm76, 1, 0
    %v81 = vcvt.s32.f32 %v77
    %v82 = vcvt.s32.f32 %v78
    %v83 = vcvt.s32.f32 %v79
    %v84 = vcvt.s32.f32 %v80
    %v85 = vld [vmem:[%s2] sm:$0xff]
    %v86 = vld [vmem:[%s2 + $0x8] sm:$0xff]
    %v87 = vld [vmem:[%s2 + $0x10] sm:$0xff]
    %v88 = vld [vmem:[%s2 + $0x18] sm:$0xff]
    %v89 = vld [vmem:[%s2 + $0x20] sm:$0xff]
    %v90 = vld [vmem:[%s2 + $0x28] sm:$0xff]
    %v91 = vld [vmem:[%s2 + $0x30] sm:$0xff]
    %v92 = vld [vmem:[%s2 + $0x38] sm:$0xff]
    %v93 = vld [vmem:[%s2 + $0x40] sm:$0xff]
    %v94 = vld [vmem:[%s2 + $0x48] sm:$0xff]
    %v95 = vld [vmem:[%s2 + $0x50] sm:$0xff]
    %v96 = vld [vmem:[%s2 + $0x58] sm:$0xff]
    %v97 = vld [vmem:[%s2 + $0x60] sm:$0xff]
    %v98 = vld [vmem:[%s2 + $0x68] sm:$0xff]
    %v99 = vld [vmem:[%s2 + $0x70] sm:$0xff]
    %v100 = vld [vmem:[%s2 + $0x78] sm:$0xff]
    %v101 = vld [vmem:[%s2 + $0x80] sm:$0xff]
    %v102 = vld [vmem:[%s2 + $0x88] sm:$0xff]
    %v103 = vld [vmem:[%s2 + $0x90] sm:$0xff]
    %v104 = vld [vmem:[%s2 + $0x98] sm:$0xff]
    %v105 = vld [vmem:[%s2 + $0xa0] sm:$0xff]
    %v106 = vld [vmem:[%s2 + $0xa8] sm:$0xff]
    %v107 = vld [vmem:[%s2 + $0xb0] sm:$0xff]
    %v108 = vld [vmem:[%s2 + $0xb8] sm:$0xff]
    %v109 = vld [vmem:[%s2 + $0xc0] sm:$0xff]
    %v110 = vld [vmem:[%s2 + $0xc8] sm:$0xff]
    %v111 = vld [vmem:[%s2 + $0xd0] sm:$0xff]
    %v112 = vld [vmem:[%s2 + $0xd8] sm:$0xff]
    %v113 = vld [vmem:[%s2 + $0xe0] sm:$0xff]
    %v114 = vld [vmem:[%s2 + $0xe8] sm:$0xff]
    %v115 = vld [vmem:[%s2 + $0xf0] sm:$0xff]
    %v116 = vld [vmem:[%s2 + $0xf8] sm:$0xff]
    %117 = vmatprep.subr.mxu0 0.0
    %118 = vmatpush1.msra.mxu0 %v85
    %119 = vmatprep.subr.mxu0 0.0
    %120 = vmatpush1.msra.mxu0 %v86
    %121 = vmatprep.subr.mxu0 0.0
    %122 = vmatpush1.msra.mxu0 %v87
    %123 = vmatprep.subr.mxu0 0.0
    %124 = vmatpush1.msra.mxu0 %v88
    %125 = vmatprep.subr.mxu0 0.0
    %126 = vmatpush1.msra.mxu0 %v89
    %127 = vmatprep.subr.mxu0 0.0
    %128 = vmatpush1.msra.mxu0 %v90
    %129 = vmatprep.subr.mxu0 0.0
    %130 = vmatpush1.msra.mxu0 %v91
    %131 = vmatprep.subr.mxu0 0.0
    %132 = vmatpush1.msra.mxu0 %v92
    %133 = vmatprep.subr.mxu0 0.0
    %134 = vmatpush1.msra.mxu0 %v93
    %135 = vmatprep.subr.mxu0 0.0
    %136 = vmatpush1.msra.mxu0 %v94
    %137 = vmatprep.subr.mxu0 0.0
    %138 = vmatpush1.msra.mxu0 %v95
    %139 = vmatprep.subr.mxu0 0.0
    %140 = vmatpush1.msra.mxu0 %v96
    %141 = vmatprep.subr.mxu0 0.0
    %142 = vmatpush1.msra.mxu0 %v97
    %143 = vmatprep.subr.mxu0 0.0
    %144 = vmatpush1.msra.mxu0 %v98
    %145 = vmatprep.subr.mxu0 0.0
    %146 = vmatpush1.msra.mxu0 %v99
    %147 = vmatprep.subr.mxu0 0.0
    %148 = vmatpush1.msra.mxu0 %v100
    %149 = vmatprep.subr.mxu0 0.0
    %150 = vmatpush1.msra.mxu0 %v101
    %151 = vmatprep.subr.mxu0 0.0
    %152 = vmatpush1.msra.mxu0 %v102
    %153 = vmatprep.subr.mxu0 0.0
    %154 = vmatpush1.msra.mxu0 %v103
    %155 = vmatprep.subr.mxu0 0.0
    %156 = vmatpush1.msra.mxu0 %v104
    %157 = vmatprep.subr.mxu0 0.0
    %158 = vmatpush1.msra.mxu0 %v105
    %159 = vmatprep.subr.mxu0 0.0
    %160 = vmatpush1.msra.mxu0 %v106
    %161 = vmatprep.subr.mxu0 0.0
    %162 = vmatpush1.msra.mxu0 %v107
    %163 = vmatprep.subr.mxu0 0.0
    %164 = vmatpush1.msra.mxu0 %v108
    %165 = vmatprep.subr.mxu0 0.0
    %166 = vmatpush1.msra.mxu0 %v109
    %167 = vmatprep.subr.mxu0 0.0
    %168 = vmatpush1.msra.mxu0 %v110
    %169 = vmatprep.subr.mxu0 0.0
    %170 = vmatpush1.msra.mxu0 %v111
    %171 = vmatprep.subr.mxu0 0.0
    %172 = vmatpush1.msra.mxu0 %v112
    %173 = vmatprep.subr.mxu0 0.0
    %174 = vmatpush1.msra.mxu0 %v113
    %175 = vmatprep.subr.mxu0 0.0
    %176 = vmatpush1.msra.mxu0 %v114
    %177 = vmatprep.subr.mxu0 0.0
    %178 = vmatpush1.msra.mxu0 %v115
    %179 = vmatprep.subr.mxu0 0.0
    %180 = vmatpush1.msra.mxu0 %v116
    %181 = vmatprep.mubr.f32.mxu0 %v82
    %182 = vmatmul.mubr.f32.gmra.mrb[0].mxu0 %v81
    %v183 = vpop.f32.mrb[0].mxu0
    %v184 = vadd.f32 0.0, %v183
    %v185 = vpop.f32.mrb[0].mxu0
    %186 = vmatprep.mubr.f32.mxu0 %v84
    %187 = vmatmul.mubr.f32.gmra.mrb[0].mxu0 %v83
    %v188 = vpop.f32.mrb[0].mxu0
    %v189 = vadd.f32 0.0, %v188
    %v190 = vpop.f32.mrb[0].mxu0
    %191 = vdwg.mxu0
    %vm192 = vcmask 261120
    %193 = vst.msk [vmem:[#allocation2] sm:$0xff] %vm192, %v184
    %194 = vst.msk [vmem:[#allocation2 + $0x8] sm:$0xff] %vm192, %v189
    // Predicated region
    $region14: #{tpu_custom_call.1} parent=1 // pred_check
      _
    $region15: #{tpu_custom_call.1} parent=1 // pred_check_branch
      %196 = sbr.rel (0) target = $region17
    $region16: #{tpu_custom_call.1} parent=1 // pred_region
      %s198 = ssub.s32 256, 256
      %199 = vsyncadd [#allocation3], %s198
      %s200 = sshll.u32 [#allocation2], 4
      %s201 = int_to_ptr.vmem [resolvable:$true] %s200
      %206 = dma.vmem_to_hbm [thread:$0]  %s201, 256, %s3, [#allocation3], 128, 128, 8
    $region17: #{tpu_custom_call.1} parent=1 // pred_fallthru
      _
    // Predicated region
    $region18: #{tpu_custom_call.1} parent=1 // pred_check
      _
    $region19: #{tpu_custom_call.1} parent=1 // pred_check_branch
      %208 = sbr.rel (0) target = $region21
    $region20: #{tpu_custom_call.1} parent=1 // pred_region
      %209 = dma.done [#allocation3], 256
    $region21: #{tpu_custom_call.1} parent=1 // pred_fallthru
      _
    %210 = vsyncpa [#allocation3], 1

</llo_original>
